<compile_context>
chip_gen: v6e
topology: v6e:2x2x1
jax: 0.10.0
libtpu: 0.0.40
codegen_flags: <defaults>
</compile_context>

<pallas_src>
import jax
import jax.numpy as jnp
import numpy as np
from jax.experimental import pallas as pl
from jax.experimental.pallas import tpu as pltpu


def _fused_upsample_kernel(x_ref, mt_ref, scale_ref, o_ref):
    # x_ref:     (N*C, H*W)          flattened original-resolution planes (VMEM)
    # mt_ref:    (H*W, Hout*Wout)    transposed Kronecker polyphase operator (VMEM)
    # scale_ref: (N*C, 1)            per-(batch,channel) uniform depthwise tap weight
    # o_ref:     (N*C, Hout*Wout)    flattened output planes (lane-dense store)
    xs = x_ref[...] * scale_ref[...]                      # one broadcast VPU multiply
    o_ref[...] = jnp.dot(
        xs, mt_ref[...], preferred_element_type=jnp.float32
    ).astype(o_ref.dtype)


def _polyphase_counts(n_in, scale):
    """Banded (n_in*scale, n_in) matrix of polyphase tap counts.

    A[i, h] = number of taps of the length-(scale+1) window centered on output
    position i (on the nearest-upsampled, zero-padded axis) that read source
    pixel h.  Border taps falling outside the plane are dropped, matching
    conv2d(padding=scale//2) over the zero-padded upsampled input.
    """
    k = scale + 1
    p = scale // 2
    n_out = n_in * scale
    a = np.zeros((n_out, n_in), np.float32)
    for i in range(n_out):
        for u in range(i - p, i - p + k):          # window in upsampled coordinates
            if 0 <= u < n_out:
                a[i, u // scale] += 1.0
    return a


def fixed_upsample(t, weight, scale_factor):
    """Pallas equivalent of FixedUpsample.forward.

    t:      (N, C, H, W) float32
    weight: (C, 1, k, k) float32, k = scale_factor + 1, uniform taps per channel
    """
    if t is None:
        return t
    s = scale_factor
    assert isinstance(s, int) and s > 1 and s % 2 == 0, \
        "module requires even integer scale_factor > 1"
    n, c, h, w = t.shape
    h_out, w_out = h * s, w * s
    nc, hw, hw_out = n * c, h * w, h_out * w_out

    # Host-side polyphase operator:  vec(y_c) = kron(A_h, A_w) @ vec(x_c)
    a_h = _polyphase_counts(h, s)                       # (H_out, H)
    a_w = _polyphase_counts(w, s)                       # (W_out, W)
    m_t = jnp.asarray(np.kron(a_h, a_w).T)              # (H*W, H_out*W_out)

    # The module fills every tap of channel c with one value -> one scalar/channel.
    # Verify that assumption when the weight is concrete (skip under tracing).
    try:
        w_np = np.asarray(weight)
    except Exception:
        w_np = None
    if w_np is not None and not np.allclose(w_np, w_np[:, :, :1, :1]):
        raise ValueError("FixedUpsample expects uniform depthwise taps per channel")

    scale = weight[:, 0, 0, 0].astype(jnp.float32)                       # (C,)
    scale_rows = jnp.broadcast_to(scale[None, :], (n, c)).reshape(nc, 1)  # (N*C, 1)

    x_flat = t.reshape(nc, hw)                           # metadata-only for NCHW

    out_flat = pl.pallas_call(
        _fused_upsample_kernel,
        out_shape=jax.ShapeDtypeStruct((nc, hw_out), t.dtype),
        grid_spec=pltpu.PrefetchScalarGridSpec(
            num_scalar_prefetch=0,
            grid=(1,),                                   # whole problem in one step
            in_specs=[
                pl.BlockSpec((nc, hw), lambda i: (0, 0)),
                pl.BlockSpec((hw, hw_out), lambda i: (0, 0)),
                pl.BlockSpec((nc, 1), lambda i: (0, 0)),
            ],
            out_specs=pl.BlockSpec((nc, hw_out), lambda i: (0, 0)),
        ),
        compiler_params=pltpu.CompilerParams(
            dimension_semantics=("arbitrary",)),
    )(x_flat, m_t, scale_rows)

    return out_flat.reshape(n, c, h_out, w_out)          # metadata-only reshape


def upsample(t, weight, scale_factor, deterministic=True):
    """Pallas equivalent of Upsample.forward (only deterministic path implemented)."""
    assert deterministic, "non-deterministic (bilinear) path not implemented"
    return fixed_upsample(t, weight, scale_factor)


def _reference(t, weight, scale_factor):
    """Pure-JAX/XLA reference (explicit upsample + depthwise conv) for verification."""
    s = scale_factor
    p = s // 2
    c = t.shape[1]
    x_up = jnp.repeat(jnp.repeat(t, s, axis=2), s, axis=3)
    return jax.lax.conv_general_dilated(
        x_up, weight, window_strides=(1, 1), padding=((p, p), (p, p)),
        feature_group_count=c, dimension_numbers=("NCHW", "OIHW", "NCHW"))


if __name__ == "__main__":
    # Module config: Upsample(channel=4, scale_factor=2, deterministic=True)
    batch, channel, height, width = 2, 4, 16, 16
    scale_factor = 2
    kernel_size = scale_factor + 1

    key = jax.random.PRNGKey(0)
    x = jax.random.normal(key, (batch, channel, height, width), dtype=jnp.float32)

    # Deterministic parameter init: weight filled with 1/(k*k), shape (C, 1, k, k).
    weight = jnp.full((channel, 1, kernel_size, kernel_size),
                      1.0 / (kernel_size * kernel_size), dtype=jnp.float32)

    out = upsample(x, weight, scale_factor, deterministic=True)
    out = jax.block_until_ready(out)

    assert out.shape == (batch, channel, height * scale_factor, width * scale_factor)

    ref = jax.block_until_ready(_reference(x, weight, scale_factor))
    np.testing.assert_allclose(np.asarray(out), np.asarray(ref), rtol=1e-5, atol=1e-5)

    print("KERNEL_OK")
</pallas_src>

<mosaic_0001>
module attributes {stable_mosaic.version = 11 : i64} {
  func.func @_fused_upsample_kernel(%arg0: i32, %arg1: memref<8x256xf32, #tpu.memory_space<vmem>>, %arg2: memref<256x1024xf32, #tpu.memory_space<vmem>>, %arg3: memref<8x1xf32, #tpu.memory_space<vmem>>, %arg4: memref<8x1024xf32, #tpu.memory_space<vmem>>) attributes {dimension_semantics = [#tpu.dimension_semantics<arbitrary>], iteration_bounds = array<i64: 1>, scalar_prefetch = 0 : i64, scratch_operands = 0 : i64, tpu.core_type = #tpu.core_type<tc>, window_params = [{pipeline_mode = #tpu.pipeline_mode<synchronous>, transform_indices = @transform_0, window_bounds = array<i64: 8, 256>}, {pipeline_mode = #tpu.pipeline_mode<synchronous>, transform_indices = @transform_1, window_bounds = array<i64: 256, 1024>}, {pipeline_mode = #tpu.pipeline_mode<synchronous>, transform_indices = @transform_2, window_bounds = array<i64: 8, 1>}, {pipeline_mode = #tpu.pipeline_mode<synchronous>, transform_indices = @transform_3, window_bounds = array<i64: 8, 1024>}]} {
    %c0 = arith.constant 0 : index
    %c0_0 = arith.constant 0 : index
    %0 = vector.load %arg1[%c0, %c0_0] : memref<8x256xf32, #tpu.memory_space<vmem>>, vector<8x256xf32>
    %c0_1 = arith.constant 0 : index
    %c0_2 = arith.constant 0 : index
    %1 = vector.load %arg3[%c0_1, %c0_2] : memref<8x1xf32, #tpu.memory_space<vmem>>, vector<8x1xf32>
    %2 = vector.broadcast %1 : vector<8x1xf32> to vector<8x256xf32>
    %3 = arith.mulf %0, %2 : vector<8x256xf32>
    %c0_3 = arith.constant 0 : index
    %c0_4 = arith.constant 0 : index
    %4 = vector.load %arg2[%c0_3, %c0_4] : memref<256x1024xf32, #tpu.memory_space<vmem>>, vector<256x1024xf32>
    %cst = arith.constant dense<0.000000e+00> : vector<8x1024xf32>
    %5 = tpu.matmul %3, %4, %cst {dimension_numbers = #tpu.dot_dimension_numbers<[1], [0], [0], [1], [0, 0, 1, 1], [], []>} : vector<8x256xf32>, vector<256x1024xf32>, vector<8x1024xf32> -> vector<8x1024xf32>
    %c0_5 = arith.constant 0 : index
    %c0_6 = arith.constant 0 : index
    %6 = vector.load %arg4[%c0_5, %c0_6] : memref<8x1024xf32, #tpu.memory_space<vmem>>, vector<8x1024xf32>
    tpu.vector_store %arg4[%c0_5, %c0_6], %5 {strides = array<i32>} : memref<8x1024xf32, #tpu.memory_space<vmem>>, vector<8x1024xf32>,
    return
  }
  func.func @transform_0(%arg0: i32) -> (i32, i32) {
    %c0_i32 = arith.constant 0 : i32
    %c0_i32_0 = arith.constant 0 : i32
    %c0_i32_1 = arith.constant 0 : i32
    return %c0_i32, %c0_i32_0 : i32, i32
  }
  func.func @transform_1(%arg0: i32) -> (i32, i32) {
    %c0_i32 = arith.constant 0 : i32
    %c0_i32_0 = arith.constant 0 : i32
    %c0_i32_1 = arith.constant 0 : i32
    return %c0_i32, %c0_i32_0 : i32, i32
  }
  func.func @transform_2(%arg0: i32) -> (i32, i32) {
    %c0_i32 = arith.constant 0 : i32
    %c0_i32_0 = arith.constant 0 : i32
    %c0_i32_1 = arith.constant 0 : i32
    return %c0_i32, %c0_i32_0 : i32, i32
  }
  func.func @transform_3(%arg0: i32) -> (i32, i32) {
    %c0_i32 = arith.constant 0 : i32
    %c0_i32_0 = arith.constant 0 : i32
    %c0_i32_1 = arith.constant 0 : i32
    return %c0_i32, %c0_i32_0 : i32, i32
  }
}

</mosaic_0001>

<llo_original>
// kernel: tpu_custom_call.1
$region0: #{tpu_custom_call.1}
  #allocation0 [shape = 'u32[]', space=smem, size = 0x4, offset = 0x4, fixed_abs, tag = 'smem constant byte address 0x4 - core index']
  #allocation1 [shape = 'u32[144,128]{1,0:T(1,128)}', space=vmem, size = 0x12000, scoped, tag = 'internal scratch']
  %s0 = inlined_call_operand.hbm [shape: f32[8,256], index: 0, kind: input, shape index: {}]
  %s1 = inlined_call_operand.hbm [shape: f32[256,1024], index: 1, kind: input, shape index: {}]
  %s2 = inlined_call_operand.vmem [shape: f32[8,1], index: 2, kind: input, shape index: {}]
  %s3 = inlined_call_operand.hbm [shape: f32[8,1024], index: 3, kind: output, shape index: {}]
  %s4 = sld [smem:[#allocation0]]
  $region30: #{tpu_custom_call.1} parent=0
    _
  %s6 = ssub.s32 1, %s4
  %s7 = scalar_select 0, %s6, %s4
  $region1: #{tpu_custom_call.1} parent=0
    #allocation2 [shape = 'u8[8192]{0}', space=vmem, size = 0x2000, scoped, tag = 'input window, operand 0, single buffered']
    #allocation3 [shape = 's32[1]{0}', space=sflag, size = 0x4, scoped, tag = 'scoped memory for tpu_custom_call.1']
    #allocation4 [shape = 's32[1]{0}', space=sflag, size = 0x4, scoped, tag = 'scoped memory for tpu_custom_call.1']
    #allocation5 [shape = 'u8[1048576]{0}', space=vmem, size = 0x100000, scoped, tag = 'input window, operand 1, single buffered']
    #allocation6 [shape = 's32[1]{0}', space=sflag, size = 0x4, scoped, tag = 'scoped memory for tpu_custom_call.1']
    #allocation7 [shape = 'u8[32768]{0}', space=vmem, size = 0x8000, scoped, tag = 'output window, operand 0, single buffered']
    %8 = vsyncpa [#allocation3], 0
    %9 = vsyncpa [#allocation6], 0
    %10 = vsyncpa [#allocation4], 0
    // Predicated region
    $region2: #{tpu_custom_call.1} parent=1 // pred_check
      _
    $region3: #{tpu_custom_call.1} parent=1 // pred_check_branch
      %12 = sbr.rel (0) target = $region5
    $region4: #{tpu_custom_call.1} parent=1 // pred_region
      %s14 = ssub.s32 256, 256
      %15 = vsyncadd [#allocation3], %s14
      %s17 = sshll.u32 [#allocation2], 4
      %s18 = int_to_ptr.vmem [resolvable:$true] %s17
      %20 = dma.hbm_to_vmem [thread:$0]  %s0, 256, %s18, [#allocation3]
    $region5: #{tpu_custom_call.1} parent=1 // pred_fallthru
      _
    // Predicated region
    $region6: #{tpu_custom_call.1} parent=1 // pred_check
      _
    $region7: #{tpu_custom_call.1} parent=1 // pred_check_branch
      %22 = sbr.rel (0) target = $region9
    $region8: #{tpu_custom_call.1} parent=1 // pred_region
      %s24 = ssub.s32 32768, 32768
      %25 = vsyncadd [#allocation6], %s24
      %s26 = sshll.u32 [#allocation5], 4
      %s27 = int_to_ptr.vmem [resolvable:$true] %s26
      %32 = dma.hbm_to_vmem [thread:$0]  %s1, 32768, %s27, [#allocation6], 1024, 1024, 64
    $region9: #{tpu_custom_call.1} parent=1 // pred_fallthru
      _
    // Predicated region
    $region10: #{tpu_custom_call.1} parent=1 // pred_check
      _
    $region11: #{tpu_custom_call.1} parent=1 // pred_check_branch
      %34 = sbr.rel (0) target = $region13
    $region12: #{tpu_custom_call.1} parent=1 // pred_region
      _
    $region13: #{tpu_custom_call.1} parent=1 // pred_fallthru
      _
    // Predicated region
    $region14: #{tpu_custom_call.1} parent=1 // pred_check
      _
    $region15: #{tpu_custom_call.1} parent=1 // pred_check_branch
      %36 = sbr.rel (0) target = $region17
    $region16: #{tpu_custom_call.1} parent=1 // pred_region
      %37 = dma.done [#allocation3], 256
    $region17: #{tpu_custom_call.1} parent=1 // pred_fallthru
      _
    // Predicated region
    $region18: #{tpu_custom_call.1} parent=1 // pred_check
      _
    $region19: #{tpu_custom_call.1} parent=1 // pred_check_branch
      %39 = sbr.rel (0) target = $region21
    $region20: #{tpu_custom_call.1} parent=1 // pred_region
      %40 = dma.done [#allocation6], 32768
    $region21: #{tpu_custom_call.1} parent=1 // pred_fallthru
      _
    %v41 = vld [vmem:[#allocation2] sm:$0xff]
    %v42 = vld [vmem:[#allocation2 + $0x8] sm:$0xff]
    %v43 = vld [vmem:[%s2] sm:$0xff]
    %45 = vset.pattern.permute.xlu0 0
    %46 = vperm.xlu0 %45, %v43
    %v47 = vpop.permute.xlu0 %46
    %v49 = vmul.f32 %v41, %v47
    %v50 = vmul.f32 %v42, %v47
    %v51 = vld [vmem:[#allocation5] sm:$0xff]
    %v52 = vld [vmem:[#allocation5 + $0x8] sm:$0xff]
    %v53 = vld [vmem:[#allocation5 + $0x10] sm:$0xff]
    %v54 = vld [vmem:[#allocation5 + $0x18] sm:$0xff]
    %v55 = vld [vmem:[#allocation5 + $0x20] sm:$0xff]
    %v56 = vld [vmem:[#allocation5 + $0x28] sm:$0xff]
    %v57 = vld [vmem:[#allocation5 + $0x30] sm:$0xff]
    %v58 = vld [vmem:[#allocation5 + $0x38] sm:$0xff]
    %v59 = vld [vmem:[#allocation5 + $0x40] sm:$0xff]
    %v60 = vld [vmem:[#allocation5 + $0x48] sm:$0xff]
    %v61 = vld [vmem:[#allocation5 + $0x50] sm:$0xff]
    %v62 = vld [vmem:[#allocation5 + $0x58] sm:$0xff]
    %v63 = vld [vmem:[#allocation5 + $0x60] sm:$0xff]
    %v64 = vld [vmem:[#allocation5 + $0x68] sm:$0xff]
    %v65 = vld [vmem:[#allocation5 + $0x70] sm:$0xff]
    %v66 = vld [vmem:[#allocation5 + $0x78] sm:$0xff]
    %v67 = vld [vmem:[#allocation5 + $0x80] sm:$0xff]
    %v68 = vld [vmem:[#allocation5 + $0x88] sm:$0xff]
    %v69 = vld [vmem:[#allocation5 + $0x90] sm:$0xff]
    %v70 = vld [vmem:[#allocation5 + $0x98] sm:$0xff]
    %v71 = vld [vmem:[#allocation5 + $0xa0] sm:$0xff]
    %v72 = vld [vmem:[#allocation5 + $0xa8] sm:$0xff]
    %v73 = vld [vmem:[#allocation5 + $0xb0] sm:$0xff]
    %v74 = vld [vmem:[#allocation5 + $0xb8] sm:$0xff]
    %v75 = vld [vmem:[#allocation5 + $0xc0] sm:$0xff]
    %v76 = vld [vmem:[#allocation5 + $0xc8] sm:$0xff]
    %v77 = vld [vmem:[#allocation5 + $0xd0] sm:$0xff]
    %v78 = vld [vmem:[#allocation5 + $0xd8] sm:$0xff]
    %v79 = vld [vmem:[#allocation5 + $0xe0] sm:$0xff]
    %v80 = vld [vmem:[#allocation5 + $0xe8] sm:$0xff]
    %v81 = vld [vmem:[#allocation5 + $0xf0] sm:$0xff]
    %v82 = vld [vmem:[#allocation5 + $0xf8] sm:$0xff]
    %v83 = vld [vmem:[#allocation5 + $0x100] sm:$0xff]
    %v84 = vld [vmem:[#allocation5 + $0x108] sm:$0xff]
    %v85 = vld [vmem:[#allocation5 + $0x110] sm:$0xff]
    %v86 = vld [vmem:[#allocation5 + $0x118] sm:$0xff]
    %v87 = vld [vmem:[#allocation5 + $0x120] sm:$0xff]
    %v88 = vld [vmem:[#allocation5 + $0x128] sm:$0xff]
    %v89 = vld [vmem:[#allocation5 + $0x130] sm:$0xff]
    %v90 = vld [vmem:[#allocation5 + $0x138] sm:$0xff]
    %v91 = vld [vmem:[#allocation5 + $0x140] sm:$0xff]
    %v92 = vld [vmem:[#allocation5 + $0x148] sm:$0xff]
    %v93 = vld [vmem:[#allocation5 + $0x150] sm:$0xff]
    %v94 = vld [vmem:[#allocation5 + $0x158] sm:$0xff]
    %v95 = vld [vmem:[#allocation5 + $0x160] sm:$0xff]
    %v96 = vld [vmem:[#allocation5 + $0x168] sm:$0xff]
    %v97 = vld [vmem:[#allocation5 + $0x170] sm:$0xff]
    %v98 = vld [vmem:[#allocation5 + $0x178] sm:$0xff]
    %v99 = vld [vmem:[#allocation5 + $0x180] sm:$0xff]
    %v100 = vld [vmem:[#allocation5 + $0x188] sm:$0xff]
    %v101 = vld [vmem:[#allocation5 + $0x190] sm:$0xff]
    %v102 = vld [vmem:[#allocation5 + $0x198] sm:$0xff]
    %v103 = vld [vmem:[#allocation5 + $0x1a0] sm:$0xff]
    %v104 = vld [vmem:[#allocation5 + $0x1a8] sm:$0xff]
    %v105 = vld [vmem:[#allocation5 + $0x1b0] sm:$0xff]
    %v106 = vld [vmem:[#allocation5 + $0x1b8] sm:$0xff]
    %v107 = vld [vmem:[#allocation5 + $0x1c0] sm:$0xff]
    %v108 = vld [vmem:[#allocation5 + $0x1c8] sm:$0xff]
    %v109 = vld [vmem:[#allocation5 + $0x1d0] sm:$0xff]
    %v110 = vld [vmem:[#allocation5 + $0x1d8] sm:$0xff]
    %v111 = vld [vmem:[#allocation5 + $0x1e0] sm:$0xff]
    %v112 = vld [vmem:[#allocation5 + $0x1e8] sm:$0xff]
    %v113 = vld [vmem:[#allocation5 + $0x1f0] sm:$0xff]
    %v114 = vld [vmem:[#allocation5 + $0x1f8] sm:$0xff]
    %v115 = vld [vmem:[#allocation5 + $0x200] sm:$0xff]
    %v116 = vld [vmem:[#allocation5 + $0x208] sm:$0xff]
    %v117 = vld [vmem:[#allocation5 + $0x210] sm:$0xff]
    %v118 = vld [vmem:[#allocation5 + $0x218] sm:$0xff]
    %v119 = vld [vmem:[#allocation5 + $0x220] sm:$0xff]
    %v120 = vld [vmem:[#allocation5 + $0x228] sm:$0xff]
    %v121 = vld [vmem:[#allocation5 + $0x230] sm:$0xff]
    %v122 = vld [vmem:[#allocation5 + $0x238] sm:$0xff]
    %v123 = vld [vmem:[#allocation5 + $0x240] sm:$0xff]
    %v124 = vld [vmem:[#allocation5 + $0x248] sm:$0xff]
    %v125 = vld [vmem:[#allocation5 + $0x250] sm:$0xff]
    %v126 = vld [vmem:[#allocation5 + $0x258] sm:$0xff]
    %v127 = vld [vmem:[#allocation5 + $0x260] sm:$0xff]
    %v128 = vld [vmem:[#allocation5 + $0x268] sm:$0xff]
    %v129 = vld [vmem:[#allocation5 + $0x270] sm:$0xff]
    %v130 = vld [vmem:[#allocation5 + $0x278] sm:$0xff]
    %v131 = vld [vmem:[#allocation5 + $0x280] sm:$0xff]
    %v132 = vld [vmem:[#allocation5 + $0x288] sm:$0xff]
    %v133 = vld [vmem:[#allocation5 + $0x290] sm:$0xff]
    %v134 = vld [vmem:[#allocation5 + $0x298] sm:$0xff]
    %v135 = vld [vmem:[#allocation5 + $0x2a0] sm:$0xff]
    %v136 = vld [vmem:[#allocation5 + $0x2a8] sm:$0xff]
    %v137 = vld [vmem:[#allocation5 + $0x2b0] sm:$0xff]
    %v138 = vld [vmem:[#allocation5 + $0x2b8] sm:$0xff]
    %v139 = vld [vmem:[#allocation5 + $0x2c0] sm:$0xff]
    %v140 = vld [vmem:[#allocation5 + $0x2c8] sm:$0xff]
    %v141 = vld [vmem:[#allocation5 + $0x2d0] sm:$0xff]
    %v142 = vld [vmem:[#allocation5 + $0x2d8] sm:$0xff]
    %v143 = vld [vmem:[#allocation5 + $0x2e0] sm:$0xff]
    %v144 = vld [vmem:[#allocation5 + $0x2e8] sm:$0xff]
    %v145 = vld [vmem:[#allocation5 + $0x2f0] sm:$0xff]
    %v146 = vld [vmem:[#allocation5 + $0x2f8] sm:$0xff]
    %v147 = vld [vmem:[#allocation5 + $0x300] sm:$0xff]
    %v148 = vld [vmem:[#allocation5 + $0x308] sm:$0xff]
    %v149 = vld [vmem:[#allocation5 + $0x310] sm:$0xff]
    %v150 = vld [vmem:[#allocation5 + $0x318] sm:$0xff]
    %v151 = vld [vmem:[#allocation5 + $0x320] sm:$0xff]
    %v152 = vld [vmem:[#allocation5 + $0x328] sm:$0xff]
    %v153 = vld [vmem:[#allocation5 + $0x330] sm:$0xff]
    %v154 = vld [vmem:[#allocation5 + $0x338] sm:$0xff]
    %v155 = vld [vmem:[#allocation5 + $0x340] sm:$0xff]
    %v156 = vld [vmem:[#allocation5 + $0x348] sm:$0xff]
    %v157 = vld [vmem:[#allocation5 + $0x350] sm:$0xff]
    %v158 = vld [vmem:[#allocation5 + $0x358] sm:$0xff]
    %v159 = vld [vmem:[#allocation5 + $0x360] sm:$0xff]
    %v160 = vld [vmem:[#allocation5 + $0x368] sm:$0xff]
    %v161 = vld [vmem:[#allocation5 + $0x370] sm:$0xff]
    %v162 = vld [vmem:[#allocation5 + $0x378] sm:$0xff]
    %v163 = vld [vmem:[#allocation5 + $0x380] sm:$0xff]
    %v164 = vld [vmem:[#allocation5 + $0x388] sm:$0xff]
    %v165 = vld [vmem:[#allocation5 + $0x390] sm:$0xff]
    %v166 = vld [vmem:[#allocation5 + $0x398] sm:$0xff]
    %v167 = vld [vmem:[#allocation5 + $0x3a0] sm:$0xff]
    %v168 = vld [vmem:[#allocation5 + $0x3a8] sm:$0xff]
    %v169 = vld [vmem:[#allocation5 + $0x3b0] sm:$0xff]
    %v170 = vld [vmem:[#allocation5 + $0x3b8] sm:$0xff]
    %v171 = vld [vmem:[#allocation5 + $0x3c0] sm:$0xff]
    %v172 = vld [vmem:[#allocation5 + $0x3c8] sm:$0xff]
    %v173 = vld [vmem:[#allocation5 + $0x3d0] sm:$0xff]
    %v174 = vld [vmem:[#allocation5 + $0x3d8] sm:$0xff]
    %v175 = vld [vmem:[#allocation5 + $0x3e0] sm:$0xff]
    %v176 = vld [vmem:[#allocation5 + $0x3e8] sm:$0xff]
    %v177 = vld [vmem:[#allocation5 + $0x3f0] sm:$0xff]
    %v178 = vld [vmem:[#allocation5 + $0x3f8] sm:$0xff]
    %v179 = vld [vmem:[#allocation5 + $0x400] sm:$0xff]
    %v180 = vld [vmem:[#allocation5 + $0x408] sm:$0xff]
    %v181 = vld [vmem:[#allocation5 + $0x410] sm:$0xff]
    %v182 = vld [vmem:[#allocation5 + $0x418] sm:$0xff]
    %v183 = vld [vmem:[#allocation5 + $0x420] sm:$0xff]
    %v184 = vld [vmem:[#allocation5 + $0x428] sm:$0xff]
    %v185 = vld [vmem:[#allocation5 + $0x430] sm:$0xff]
    %v186 = vld [vmem:[#allocation5 + $0x438] sm:$0xff]
    %v187 = vld [vmem:[#allocation5 + $0x440] sm:$0xff]
    %v188 = vld [vmem:[#allocation5 + $0x448] sm:$0xff]
    %v189 = vld [vmem:[#allocation5 + $0x450] sm:$0xff]
    %v190 = vld [vmem:[#allocation5 + $0x458] sm:$0xff]
    %v191 = vld [vmem:[#allocation5 + $0x460] sm:$0xff]
    %v192 = vld [vmem:[#allocation5 + $0x468] sm:$0xff]
    %v193 = vld [vmem:[#allocation5 + $0x470] sm:$0xff]
    %v194 = vld [vmem:[#allocation5 + $0x478] sm:$0xff]
    %v195 = vld [vmem:[#allocation5 + $0x480] sm:$0xff]
    %v196 = vld [vmem:[#allocation5 + $0x488] sm:$0xff]
    %v197 = vld [vmem:[#allocation5 + $0x490] sm:$0xff]
    %v198 = vld [vmem:[#allocation5 + $0x498] sm:$0xff]
    %v199 = vld [vmem:[#allocation5 + $0x4a0] sm:$0xff]
    %v200 = vld [vmem:[#allocation5 + $0x4a8] sm:$0xff]
    %v201 = vld [vmem:[#allocation5 + $0x4b0] sm:$0xff]
    %v202 = vld [vmem:[#allocation5 + $0x4b8] sm:$0xff]
    %v203 = vld [vmem:[#allocation5 + $0x4c0] sm:$0xff]
    %v204 = vld [vmem:[#allocation5 + $0x4c8] sm:$0xff]
    %v205 = vld [vmem:[#allocation5 + $0x4d0] sm:$0xff]
    %v206 = vld [vmem:[#allocation5 + $0x4d8] sm:$0xff]
    %v207 = vld [vmem:[#allocation5 + $0x4e0] sm:$0xff]
    %v208 = vld [vmem:[#allocation5 + $0x4e8] sm:$0xff]
    %v209 = vld [vmem:[#allocation5 + $0x4f0] sm:$0xff]
    %v210 = vld [vmem:[#allocation5 + $0x4f8] sm:$0xff]
    %v211 = vld [vmem:[#allocation5 + $0x500] sm:$0xff]
    %v212 = vld [vmem:[#allocation5 + $0x508] sm:$0xff]
    %v213 = vld [vmem:[#allocation5 + $0x510] sm:$0xff]
    %v214 = vld [vmem:[#allocation5 + $0x518] sm:$0xff]
    %v215 = vld [vmem:[#allocation5 + $0x520] sm:$0xff]
    %v216 = vld [vmem:[#allocation5 + $0x528] sm:$0xff]
    %v217 = vld [vmem:[#allocation5 + $0x530] sm:$0xff]
    %v218 = vld [vmem:[#allocation5 + $0x538] sm:$0xff]
    %v219 = vld [vmem:[#allocation5 + $0x540] sm:$0xff]
    %v220 = vld [vmem:[#allocation5 + $0x548] sm:$0xff]
    %v221 = vld [vmem:[#allocation5 + $0x550] sm:$0xff]
    %v222 = vld [vmem:[#allocation5 + $0x558] sm:$0xff]
    %v223 = vld [vmem:[#allocation5 + $0x560] sm:$0xff]
    %v224 = vld [vmem:[#allocation5 + $0x568] sm:$0xff]
    %v225 = vld [vmem:[#allocation5 + $0x570] sm:$0xff]
    %v226 = vld [vmem:[#allocation5 + $0x578] sm:$0xff]
    %v227 = vld [vmem:[#allocation5 + $0x580] sm:$0xff]
    %v228 = vld [vmem:[#allocation5 + $0x588] sm:$0xff]
    %v229 = vld [vmem:[#allocation5 + $0x590] sm:$0xff]
    %v230 = vld [vmem:[#allocation5 + $0x598] sm:$0xff]
    %v231 = vld [vmem:[#allocation5 + $0x5a0] sm:$0xff]
    %v232 = vld [vmem:[#allocation5 + $0x5a8] sm:$0xff]
    %v233 = vld [vmem:[#allocation5 + $0x5b0] sm:$0xff]
    %v234 = vld [vmem:[#allocation5 + $0x5b8] sm:$0xff]
    %v235 = vld [vmem:[#allocation5 + $0x5c0] sm:$0xff]
    %v236 = vld [vmem:[#allocation5 + $0x5c8] sm:$0xff]
    %v237 = vld [vmem:[#allocation5 + $0x5d0] sm:$0xff]
    %v238 = vld [vmem:[#allocation5 + $0x5d8] sm:$0xff]
    %v239 = vld [vmem:[#allocation5 + $0x5e0] sm:$0xff]
    %v240 = vld [vmem:[#allocation5 + $0x5e8] sm:$0xff]
    %v241 = vld [vmem:[#allocation5 + $0x5f0] sm:$0xff]
    %v242 = vld [vmem:[#allocation5 + $0x5f8] sm:$0xff]
    %v243 = vld [vmem:[#allocation5 + $0x600] sm:$0xff]
    %v244 = vld [vmem:[#allocation5 + $0x608] sm:$0xff]
    %v245 = vld [vmem:[#allocation5 + $0x610] sm:$0xff]
    %v246 = vld [vmem:[#allocation5 + $0x618] sm:$0xff]
    %v247 = vld [vmem:[#allocation5 + $0x620] sm:$0xff]
    %v248 = vld [vmem:[#allocation5 + $0x628] sm:$0xff]
    %v249 = vld [vmem:[#allocation5 + $0x630] sm:$0xff]
    %v250 = vld [vmem:[#allocation5 + $0x638] sm:$0xff]
    %v251 = vld [vmem:[#allocation5 + $0x640] sm:$0xff]
    %v252 = vld [vmem:[#allocation5 + $0x648] sm:$0xff]
    %v253 = vld [vmem:[#allocation5 + $0x650] sm:$0xff]
    %v254 = vld [vmem:[#allocation5 + $0x658] sm:$0xff]
    %v255 = vld [vmem:[#allocation5 + $0x660] sm:$0xff]
    %v256 = vld [vmem:[#allocation5 + $0x668] sm:$0xff]
    %v257 = vld [vmem:[#allocation5 + $0x670] sm:$0xff]
    %v258 = vld [vmem:[#allocation5 + $0x678] sm:$0xff]
    %v259 = vld [vmem:[#allocation5 + $0x680] sm:$0xff]
    %v260 = vld [vmem:[#allocation5 + $0x688] sm:$0xff]
    %v261 = vld [vmem:[#allocation5 + $0x690] sm:$0xff]
    %v262 = vld [vmem:[#allocation5 + $0x698] sm:$0xff]
    %v263 = vld [vmem:[#allocation5 + $0x6a0] sm:$0xff]
    %v264 = vld [vmem:[#allocation5 + $0x6a8] sm:$0xff]
    %v265 = vld [vmem:[#allocation5 + $0x6b0] sm:$0xff]
    %v266 = vld [vmem:[#allocation5 + $0x6b8] sm:$0xff]
    %v267 = vld [vmem:[#allocation5 + $0x6c0] sm:$0xff]
    %v268 = vld [vmem:[#allocation5 + $0x6c8] sm:$0xff]
    %v269 = vld [vmem:[#allocation5 + $0x6d0] sm:$0xff]
    %v270 = vld [vmem:[#allocation5 + $0x6d8] sm:$0xff]
    %v271 = vld [vmem:[#allocation5 + $0x6e0] sm:$0xff]
    %v272 = vld [vmem:[#allocation5 + $0x6e8] sm:$0xff]
    %v273 = vld [vmem:[#allocation5 + $0x6f0] sm:$0xff]
    %v274 = vld [vmem:[#allocation5 + $0x6f8] sm:$0xff]
    %v275 = vld [vmem:[#allocation5 + $0x700] sm:$0xff]
    %v276 = vld [vmem:[#allocation5 + $0x708] sm:$0xff]
    %v277 = vld [vmem:[#allocation5 + $0x710] sm:$0xff]
    %v278 = vld [vmem:[#allocation5 + $0x718] sm:$0xff]
    %v279 = vld [vmem:[#allocation5 + $0x720] sm:$0xff]
    %v280 = vld [vmem:[#allocation5 + $0x728] sm:$0xff]
    %v281 = vld [vmem:[#allocation5 + $0x730] sm:$0xff]
    %v282 = vld [vmem:[#allocation5 + $0x738] sm:$0xff]
    %v283 = vld [vmem:[#allocation5 + $0x740] sm:$0xff]
    %v284 = vld [vmem:[#allocation5 + $0x748] sm:$0xff]
    %v285 = vld [vmem:[#allocation5 + $0x750] sm:$0xff]
    %v286 = vld [vmem:[#allocation5 + $0x758] sm:$0xff]
    %v287 = vld [vmem:[#allocation5 + $0x760] sm:$0xff]
    %v288 = vld [vmem:[#allocation5 + $0x768] sm:$0xff]
    %v289 = vld [vmem:[#allocation5 + $0x770] sm:$0xff]
    %v290 = vld [vmem:[#allocation5 + $0x778] sm:$0xff]
    %v291 = vld [vmem:[#allocation5 + $0x780] sm:$0xff]
    %v292 = vld [vmem:[#allocation5 + $0x788] sm:$0xff]
    %v293 = vld [vmem:[#allocation5 + $0x790] sm:$0xff]
    %v294 = vld [vmem:[#allocation5 + $0x798] sm:$0xff]
    %v295 = vld [vmem:[#allocation5 + $0x7a0] sm:$0xff]
    %v296 = vld [vmem:[#allocation5 + $0x7a8] sm:$0xff]
    %v297 = vld [vmem:[#allocation5 + $0x7b0] sm:$0xff]
    %v298 = vld [vmem:[#allocation5 + $0x7b8] sm:$0xff]
    %v299 = vld [vmem:[#allocation5 + $0x7c0] sm:$0xff]
    %v300 = vld [vmem:[#allocation5 + $0x7c8] sm:$0xff]
    %v301 = vld [vmem:[#allocation5 + $0x7d0] sm:$0xff]
    %v302 = vld [vmem:[#allocation5 + $0x7d8] sm:$0xff]
    %v303 = vld [vmem:[#allocation5 + $0x7e0] sm:$0xff]
    %v304 = vld [vmem:[#allocation5 + $0x7e8] sm:$0xff]
    %v305 = vld [vmem:[#allocation5 + $0x7f0] sm:$0xff]
    %v306 = vld [vmem:[#allocation5 + $0x7f8] sm:$0xff]
    %307 = vmatprep.subr.mxu0 %v172
    %308 = vmatpush1.msra.mxu0 %v171
    %309 = vmatprep.subr.mxu0 %v164
    %310 = vmatpush1.msra.mxu0 %v163
    %311 = vmatprep.subr.mxu0 %v156
    %312 = vmatpush1.msra.mxu0 %v155
    %313 = vmatprep.subr.mxu0 %v148
    %314 = vmatpush1.msra.mxu0 %v147
    %315 = vmatprep.subr.mxu0 %v140
    %316 = vmatpush1.msra.mxu0 %v139
    %317 = vmatprep.subr.mxu0 %v132
    %318 = vmatpush1.msra.mxu0 %v131
    %319 = vmatprep.subr.mxu0 %v124
    %320 = vmatpush1.msra.mxu0 %v123
    %321 = vmatprep.subr.mxu0 %v116
    %322 = vmatpush1.msra.mxu0 %v115
    %323 = vmatprep.subr.mxu0 %v108
    %324 = vmatpush1.msra.mxu0 %v107
    %325 = vmatprep.subr.mxu0 %v100
    %326 = vmatpush1.msra.mxu0 %v99
    %327 = vmatprep.subr.mxu0 %v92
    %328 = vmatpush1.msra.mxu0 %v91
    %329 = vmatprep.subr.mxu0 %v84
    %330 = vmatpush1.msra.mxu0 %v83
    %331 = vmatprep.subr.mxu0 %v76
    %332 = vmatpush1.msra.mxu0 %v75
    %333 = vmatprep.subr.mxu0 %v68
    %334 = vmatpush1.msra.mxu0 %v67
    %335 = vmatprep.subr.mxu0 %v60
    %336 = vmatpush1.msra.mxu0 %v59
    %337 = vmatprep.subr.mxu0 %v52
    %338 = vmatpush1.msra.mxu0 %v51
    %339 = vmatprep.subr.mxu0 %v300
    %340 = vmatpush2.msra.mxu0 %v299
    %341 = vmatprep.subr.mxu0 %v292
    %342 = vmatpush2.msra.mxu0 %v291
    %343 = vmatprep.subr.mxu0 %v284
    %344 = vmatpush2.msra.mxu0 %v283
    %345 = vmatprep.subr.mxu0 %v276
    %346 = vmatpush2.msra.mxu0 %v275
    %347 = vmatprep.subr.mxu0 %v268
    %348 = vmatpush2.msra.mxu0 %v267
    %349 = vmatprep.subr.mxu0 %v260
    %350 = vmatpush2.msra.mxu0 %v259
    %351 = vmatprep.subr.mxu0 %v252
    %352 = vmatpush2.msra.mxu0 %v251
    %353 = vmatprep.subr.mxu0 %v244
    %354 = vmatpush2.msra.mxu0 %v243
    %355 = vmatprep.subr.mxu0 %v236
    %356 = vmatpush2.msra.mxu0 %v235
    %357 = vmatprep.subr.mxu0 %v228
    %358 = vmatpush2.msra.mxu0 %v227
    %359 = vmatprep.subr.mxu0 %v220
    %360 = vmatpush2.msra.mxu0 %v219
    %361 = vmatprep.subr.mxu0 %v212
    %362 = vmatpush2.msra.mxu0 %v211
    %363 = vmatprep.subr.mxu0 %v204
    %364 = vmatpush2.msra.mxu0 %v203
    %365 = vmatprep.subr.mxu0 %v196
    %366 = vmatpush2.msra.mxu0 %v195
    %367 = vmatprep.subr.mxu0 %v188
    %368 = vmatpush2.msra.mxu0 %v187
    %369 = vmatprep.subr.mxu0 %v180
    %370 = vmatpush2.msra.mxu0 %v179
    %371 = vmatprep.mubr.f32.mxu0 %v50
    %372 = vmatmul.mubr.f32.gmra.mxu0 %v49
    %v373 = vpop.f32.mrf.mxu0
    %v374 = vadd.f32 0.0, %v373
    %v375 = vpop.f32.mrf.mxu0
    %v376 = vadd.f32 0.0, %v375
    %377 = vdwg.mxu0
    %378 = vmatprep.subr.mxu0 %v174
    %379 = vmatpush1.msra.mxu0 %v173
    %380 = vmatprep.subr.mxu0 %v166
    %381 = vmatpush1.msra.mxu0 %v165
    %382 = vmatprep.subr.mxu0 %v158
    %383 = vmatpush1.msra.mxu0 %v157
    %384 = vmatprep.subr.mxu0 %v150
    %385 = vmatpush1.msra.mxu0 %v149
    %386 = vmatprep.subr.mxu0 %v142
    %387 = vmatpush1.msra.mxu0 %v141
    %388 = vmatprep.subr.mxu0 %v134
    %389 = vmatpush1.msra.mxu0 %v133
    %390 = vmatprep.subr.mxu0 %v126
    %391 = vmatpush1.msra.mxu0 %v125
    %392 = vmatprep.subr.mxu0 %v118
    %393 = vmatpush1.msra.mxu0 %v117
    %394 = vmatprep.subr.mxu0 %v110
    %395 = vmatpush1.msra.mxu0 %v109
    %396 = vmatprep.subr.mxu0 %v102
    %397 = vmatpush1.msra.mxu0 %v101
    %398 = vmatprep.subr.mxu0 %v94
    %399 = vmatpush1.msra.mxu0 %v93
    %400 = vmatprep.subr.mxu0 %v86
    %401 = vmatpush1.msra.mxu0 %v85
    %402 = vmatprep.subr.mxu0 %v78
    %403 = vmatpush1.msra.mxu0 %v77
    %404 = vmatprep.subr.mxu0 %v70
    %405 = vmatpush1.msra.mxu0 %v69
    %406 = vmatprep.subr.mxu0 %v62
    %407 = vmatpush1.msra.mxu0 %v61
    %408 = vmatprep.subr.mxu0 %v54
    %409 = vmatpush1.msra.mxu0 %v53
    %410 = vmatprep.subr.mxu0 %v302
    %411 = vmatpush2.msra.mxu0 %v301
    %412 = vmatprep.subr.mxu0 %v294
    %413 = vmatpush2.msra.mxu0 %v293
    %414 = vmatprep.subr.mxu0 %v286
    %415 = vmatpush2.msra.mxu0 %v285
    %416 = vmatprep.subr.mxu0 %v278
    %417 = vmatpush2.msra.mxu0 %v277
    %418 = vmatprep.subr.mxu0 %v270
    %419 = vmatpush2.msra.mxu0 %v269
    %420 = vmatprep.subr.mxu0 %v262
    %421 = vmatpush2.msra.mxu0 %v261
    %422 = vmatprep.subr.mxu0 %v254
    %423 = vmatpush2.msra.mxu0 %v253
    %424 = vmatprep.subr.mxu0 %v246
    %425 = vmatpush2.msra.mxu0 %v245
    %426 = vmatprep.subr.mxu0 %v238
    %427 = vmatpush2.msra.mxu0 %v237
    %428 = vmatprep.subr.mxu0 %v230
    %429 = vmatpush2.msra.mxu0 %v229
    %430 = vmatprep.subr.mxu0 %v222
    %431 = vmatpush2.msra.mxu0 %v221
    %432 = vmatprep.subr.mxu0 %v214
    %433 = vmatpush2.msra.mxu0 %v213
    %434 = vmatprep.subr.mxu0 %v206
    %435 = vmatpush2.msra.mxu0 %v205
    %436 = vmatprep.subr.mxu0 %v198
    %437 = vmatpush2.msra.mxu0 %v197
    %438 = vmatprep.subr.mxu0 %v190
    %439 = vmatpush2.msra.mxu0 %v189
    %440 = vmatprep.subr.mxu0 %v182
    %441 = vmatpush2.msra.mxu0 %v181
    %442 = vmatprep.mubr.f32.mxu0 %v50
    %443 = vmatmul.mubr.f32.gmra.mxu0 %v49
    %v444 = vpop.f32.mrf.mxu0
    %v445 = vadd.f32 0.0, %v444
    %v446 = vpop.f32.mrf.mxu0
    %v447 = vadd.f32 0.0, %v446
    %448 = vdwg.mxu0
    %449 = vmatprep.subr.mxu0 %v176
    %450 = vmatpush1.msra.mxu0 %v175
    %451 = vmatprep.subr.mxu0 %v168
    %452 = vmatpush1.msra.mxu0 %v167
    %453 = vmatprep.subr.mxu0 %v160
    %454 = vmatpush1.msra.mxu0 %v159
    %455 = vmatprep.subr.mxu0 %v152
    %456 = vmatpush1.msra.mxu0 %v151
    %457 = vmatprep.subr.mxu0 %v144
    %458 = vmatpush1.msra.mxu0 %v143
    %459 = vmatprep.subr.mxu0 %v136
    %460 = vmatpush1.msra.mxu0 %v135
    %461 = vmatprep.subr.mxu0 %v128
    %462 = vmatpush1.msra.mxu0 %v127
    %463 = vmatprep.subr.mxu0 %v120
    %464 = vmatpush1.msra.mxu0 %v119
    %465 = vmatprep.subr.mxu0 %v112
    %466 = vmatpush1.msra.mxu0 %v111
    %467 = vmatprep.subr.mxu0 %v104
    %468 = vmatpush1.msra.mxu0 %v103
    %469 = vmatprep.subr.mxu0 %v96
    %470 = vmatpush1.msra.mxu0 %v95
    %471 = vmatprep.subr.mxu0 %v88
    %472 = vmatpush1.msra.mxu0 %v87
    %473 = vmatprep.subr.mxu0 %v80
    %474 = vmatpush1.msra.mxu0 %v79
    %475 = vmatprep.subr.mxu0 %v72
    %476 = vmatpush1.msra.mxu0 %v71
    %477 = vmatprep.subr.mxu0 %v64
    %478 = vmatpush1.msra.mxu0 %v63
    %479 = vmatprep.subr.mxu0 %v56
    %480 = vmatpush1.msra.mxu0 %v55
    %481 = vmatprep.subr.mxu0 %v304
    %482 = vmatpush2.msra.mxu0 %v303
    %483 = vmatprep.subr.mxu0 %v296
    %484 = vmatpush2.msra.mxu0 %v295
    %485 = vmatprep.subr.mxu0 %v288
    %486 = vmatpush2.msra.mxu0 %v287
    %487 = vmatprep.subr.mxu0 %v280
    %488 = vmatpush2.msra.mxu0 %v279
    %489 = vmatprep.subr.mxu0 %v272
    %490 = vmatpush2.msra.mxu0 %v271
    %491 = vmatprep.subr.mxu0 %v264
    %492 = vmatpush2.msra.mxu0 %v263
    %493 = vmatprep.subr.mxu0 %v256
    %494 = vmatpush2.msra.mxu0 %v255
    %495 = vmatprep.subr.mxu0 %v248
    %496 = vmatpush2.msra.mxu0 %v247
    %497 = vmatprep.subr.mxu0 %v240
    %498 = vmatpush2.msra.mxu0 %v239
    %499 = vmatprep.subr.mxu0 %v232
    %500 = vmatpush2.msra.mxu0 %v231
    %501 = vmatprep.subr.mxu0 %v224
    %502 = vmatpush2.msra.mxu0 %v223
    %503 = vmatprep.subr.mxu0 %v216
    %504 = vmatpush2.msra.mxu0 %v215
    %505 = vmatprep.subr.mxu0 %v208
    %506 = vmatpush2.msra.mxu0 %v207
    %507 = vmatprep.subr.mxu0 %v200
    %508 = vmatpush2.msra.mxu0 %v199
    %509 = vmatprep.subr.mxu0 %v192
    %510 = vmatpush2.msra.mxu0 %v191
    %511 = vmatprep.subr.mxu0 %v184
    %512 = vmatpush2.msra.mxu0 %v183
    %513 = vmatprep.mubr.f32.mxu0 %v50
    %514 = vmatmul.mubr.f32.gmra.mxu0 %v49
    %v515 = vpop.f32.mrf.mxu0
    %v516 = vadd.f32 0.0, %v515
    %v517 = vpop.f32.mrf.mxu0
    %v518 = vadd.f32 0.0, %v517
    %519 = vdwg.mxu0
    %520 = vmatprep.subr.mxu0 %v178
    %521 = vmatpush1.msra.mxu0 %v177
    %522 = vmatprep.subr.mxu0 %v170
    %523 = vmatpush1.msra.mxu0 %v169
    %524 = vmatprep.subr.mxu0 %v162
    %525 = vmatpush1.msra.mxu0 %v161
    %526 = vmatprep.subr.mxu0 %v154
    %527 = vmatpush1.msra.mxu0 %v153
    %528 = vmatprep.subr.mxu0 %v146
    %529 = vmatpush1.msra.mxu0 %v145
    %530 = vmatprep.subr.mxu0 %v138
    %531 = vmatpush1.msra.mxu0 %v137
    %532 = vmatprep.subr.mxu0 %v130
    %533 = vmatpush1.msra.mxu0 %v129
    %534 = vmatprep.subr.mxu0 %v122
    %535 = vmatpush1.msra.mxu0 %v121
    %536 = vmatprep.subr.mxu0 %v114
    %537 = vmatpush1.msra.mxu0 %v113
    %538 = vmatprep.subr.mxu0 %v106
    %539 = vmatpush1.msra.mxu0 %v105
    %540 = vmatprep.subr.mxu0 %v98
    %541 = vmatpush1.msra.mxu0 %v97
    %542 = vmatprep.subr.mxu0 %v90
    %543 = vmatpush1.msra.mxu0 %v89
    %544 = vmatprep.subr.mxu0 %v82
    %545 = vmatpush1.msra.mxu0 %v81
    %546 = vmatprep.subr.mxu0 %v74
    %547 = vmatpush1.msra.mxu0 %v73
    %548 = vmatprep.subr.mxu0 %v66
    %549 = vmatpush1.msra.mxu0 %v65
    %550 = vmatprep.subr.mxu0 %v58
    %551 = vmatpush1.msra.mxu0 %v57
    %552 = vmatprep.subr.mxu0 %v306
    %553 = vmatpush2.msra.mxu0 %v305
    %554 = vmatprep.subr.mxu0 %v298
    %555 = vmatpush2.msra.mxu0 %v297
    %556 = vmatprep.subr.mxu0 %v290
    %557 = vmatpush2.msra.mxu0 %v289
    %558 = vmatprep.subr.mxu0 %v282
    %559 = vmatpush2.msra.mxu0 %v281
    %560 = vmatprep.subr.mxu0 %v274
    %561 = vmatpush2.msra.mxu0 %v273
    %562 = vmatprep.subr.mxu0 %v266
    %563 = vmatpush2.msra.mxu0 %v265
    %564 = vmatprep.subr.mxu0 %v258
    %565 = vmatpush2.msra.mxu0 %v257
    %566 = vmatprep.subr.mxu0 %v250
    %567 = vmatpush2.msra.mxu0 %v249
    %568 = vmatprep.subr.mxu0 %v242
    %569 = vmatpush2.msra.mxu0 %v241
    %570 = vmatprep.subr.mxu0 %v234
    %571 = vmatpush2.msra.mxu0 %v233
    %572 = vmatprep.subr.mxu0 %v226
    %573 = vmatpush2.msra.mxu0 %v225
    %574 = vmatprep.subr.mxu0 %v218
    %575 = vmatpush2.msra.mxu0 %v217
    %576 = vmatprep.subr.mxu0 %v210
    %577 = vmatpush2.msra.mxu0 %v209
    %578 = vmatprep.subr.mxu0 %v202
    %579 = vmatpush2.msra.mxu0 %v201
    %580 = vmatprep.subr.mxu0 %v194
    %581 = vmatpush2.msra.mxu0 %v193
    %582 = vmatprep.subr.mxu0 %v186
    %583 = vmatpush2.msra.mxu0 %v185
    %584 = vmatprep.mubr.f32.mxu0 %v50
    %585 = vmatmul.mubr.f32.gmra.mxu0 %v49
    %v586 = vpop.f32.mrf.mxu0
    %v587 = vadd.f32 0.0, %v586
    %v588 = vpop.f32.mrf.mxu0
    %v589 = vadd.f32 0.0, %v588
    %590 = vdwg.mxu0
    %591 = vst [vmem:[#allocation7] sm:$0xff] %v374
    %592 = vst [vmem:[#allocation7 + $0x8] sm:$0xff] %v376
    %593 = vst [vmem:[#allocation7 + $0x10] sm:$0xff] %v445
    %594 = vst [vmem:[#allocation7 + $0x18] sm:$0xff] %v447
    %595 = vst [vmem:[#allocation7 + $0x20] sm:$0xff] %v516
    %596 = vst [vmem:[#allocation7 + $0x28] sm:$0xff] %v518
    %597 = vst [vmem:[#allocation7 + $0x30] sm:$0xff] %v587
    %598 = vst [vmem:[#allocation7 + $0x38] sm:$0xff] %v589
    // Predicated region
    $region22: #{tpu_custom_call.1} parent=1 // pred_check
      _
    $region23: #{tpu_custom_call.1} parent=1 // pred_check_branch
      %600 = sbr.rel (0) target = $region25
    $region24: #{tpu_custom_call.1} parent=1 // pred_region
      %s602 = ssub.s32 1024, 1024
      %603 = vsyncadd [#allocation4], %s602
      %s605 = sshll.u32 [#allocation7], 4
      %s606 = int_to_ptr.vmem [resolvable:$true] %s605
      %608 = dma.vmem_to_hbm [thread:$0]  %s606, 1024, %s3, [#allocation4]
    $region25: #{tpu_custom_call.1} parent=1 // pred_fallthru
      _
    // Predicated region
    $region26: #{tpu_custom_call.1} parent=1 // pred_check
      _
    $region27: #{tpu_custom_call.1} parent=1 // pred_check_branch
      %610 = sbr.rel (0) target = $region29
    $region28: #{tpu_custom_call.1} parent=1 // pred_region
      %611 = dma.done [#allocation4], 1024
    $region29: #{tpu_custom_call.1} parent=1 // pred_fallthru
      _
    %612 = vsyncpa [#allocation3], 1
    %613 = vsyncpa [#allocation6], 1
    %614 = vsyncpa [#allocation4], 1

</llo_original>
